<compile_context>
chip_gen: v6e
topology: v6e:2x2x1
jax: 0.10.0
libtpu: 0.0.40
codegen_flags: <defaults>
</compile_context>

<pallas_src>
import functools
import math

import jax
import jax.numpy as jnp
import numpy as np
from jax.experimental import pallas as pl
from jax.experimental.pallas import tpu as pltpu

FEATURES = 256
BN_EPS = 1e-5
# Explicit scoped-VMEM budget: above the worst-case kernel footprint
# (~20 MiB: layer4_rn weight-resident direct conv, double-buffered), below
# v7x's 64 MiB physical VMEM/TC, and above v5e's 16 MiB default scoped limit.
VMEM_LIMIT_BYTES = 56 * 1024 * 1024


def _rup(x, m):
    return ((x + m - 1) // m) * m


def _pick_tk(kp):
    """K tile for large K (kp % 128 == 0); prefer 256-multiples for the
    256-wide MXU on v6e/v7x."""
    for t in (2048, 1536, 1024, 768, 512, 256, 384, 128):
        if kp % t == 0:
            return t
    return 128


# --------------------------------------------------------------------------
# Fused tiled matmul kernel: out = act((A @ B) * scale + shift + res1 + res2)
# bf16 in / bf16 out, f32 accumulation.
# --------------------------------------------------------------------------

def _make_mm_kernel(act, has_scale, has_shift, n_res, pre_relu, multi_k):
    def kernel(*refs):
        it = iter(refs)
        a_ref = next(it)
        b_ref = next(it)
        s_ref = next(it) if has_scale else None
        t_ref = next(it) if has_shift else None
        r1_ref = next(it) if n_res >= 1 else None
        r2_ref = next(it) if n_res >= 2 else None
        o_ref = next(it)
        acc_ref = next(it) if multi_k else None

        a = a_ref[...]
        if pre_relu:
            a = jnp.maximum(a, 0)
        part = jnp.dot(a, b_ref[...], preferred_element_type=jnp.float32)

        def epilogue(y):
            if has_scale:
                y = y * s_ref[...]
            if has_shift:
                y = y + t_ref[...]
            if n_res >= 1:
                y = y + r1_ref[...].astype(jnp.float32)
            if n_res >= 2:
                y = y + r2_ref[...].astype(jnp.float32)
            if act == "relu":
                y = jnp.maximum(y, 0.0)
            elif act == "sigmoid":
                y = 1.0 / (1.0 + jnp.exp(-y))
            return y.astype(o_ref.dtype)

        if not multi_k:
            o_ref[...] = epilogue(part)
        else:
            k = pl.program_id(2)

            @pl.when(k == 0)
            def _():
                acc_ref[...] = part

            @pl.when(k != 0)
            def _():
                acc_ref[...] = acc_ref[...] + part

            @pl.when(k == pl.num_programs(2) - 1)
            def _():
                o_ref[...] = epilogue(acc_ref[...])

    return kernel


@functools.partial(jax.jit, static_argnames=("act", "pre_relu"))
def matmul_fused(a, b, scale=None, shift=None, residual=None, residual2=None,
                 act=None, pre_relu=False):
    """a:(M,K) @ b:(K,N) with fused affine / residual / activation epilogue."""
    M, K = a.shape
    N = b.shape[1]

    # Whole-K single block (weight-resident, no K loop, no K zero-padding)
    # whenever it fits comfortably; otherwise pad K to 128 and tile.
    if K <= 2560:
        Kp, tk = K, K
    else:
        Kp = _rup(K, 128)
        tk = _pick_tk(Kp)
    nk = Kp // tk
    multi_k = nk > 1

    tn = _rup(N, 128) if N <= 512 else 512
    Np = _rup(N, tn)
    nn = Np // tn

    tm = _rup(M, 16) if M <= 512 else 512
    # Keep at least two independent output tiles when possible (v7x megacore).
    if nn < 2 and M > 32:
        while _rup(M, tm) // tm < 2 and tm > 16:
            tm = _rup(max(tm // 2, 16), 16)
    Mp = _rup(M, tm)
    nm = Mp // tm

    a = a.astype(jnp.bfloat16)
    b = b.astype(jnp.bfloat16)
    if (Mp, Kp) != (M, K):
        a = jnp.pad(a, ((0, Mp - M), (0, Kp - K)))
    if (Kp, Np) != (K, N):
        b = jnp.pad(b, ((0, Kp - K), (0, Np - N)))

    def im(fn):
        if multi_k:
            return lambda i, j, k: fn(i, j, k)
        return lambda i, j: fn(i, j, 0)

    operands = [a, b]
    in_specs = [pl.BlockSpec((tm, tk), im(lambda i, j, k: (i, k))),
                pl.BlockSpec((tk, tn), im(lambda i, j, k: (k, j)))]

    def add_vec(v):
        vp = v.astype(jnp.float32).reshape(1, -1)
        if Np != N:
            vp = jnp.pad(vp, ((0, 0), (0, Np - N)))
        operands.append(vp)
        in_specs.append(pl.BlockSpec((1, tn), im(lambda i, j, k: (0, j))))

    if scale is not None:
        add_vec(scale)
    if shift is not None:
        add_vec(shift)

    n_res = 0
    for r in (residual, residual2):
        if r is not None:
            rp = r.astype(jnp.bfloat16)
            if (Mp, Np) != (M, N):
                rp = jnp.pad(rp, ((0, Mp - M), (0, Np - N)))
            operands.append(rp)
            in_specs.append(pl.BlockSpec((tm, tn), im(lambda i, j, k: (i, j))))
            n_res += 1

    kernel = _make_mm_kernel(act, scale is not None, shift is not None,
                             n_res, pre_relu, multi_k)

    grid = (nm, nn, nk) if multi_k else (nm, nn)
    sems = (("parallel", "parallel", "arbitrary") if multi_k
            else ("parallel", "parallel"))
    scratch = [pltpu.VMEM((tm, tn), jnp.float32)] if multi_k else []

    out = pl.pallas_call(
        kernel,
        out_shape=jax.ShapeDtypeStruct((Mp, Np), jnp.bfloat16),
        grid_spec=pltpu.PrefetchScalarGridSpec(
            num_scalar_prefetch=0,
            grid=grid,
            in_specs=in_specs,
            out_specs=pl.BlockSpec((tm, tn), im(lambda i, j, k: (i, j))),
            scratch_shapes=scratch,
        ),
        compiler_params=pltpu.CompilerParams(
            dimension_semantics=sems,
            vmem_limit_bytes=VMEM_LIMIT_BYTES),
    )(*operands)
    return out[:M, :N]


# --------------------------------------------------------------------------
# Direct (no im2col) 3x3 stride-1 pad-1 conv kernel, NHWC.
# Grid = (N, out_row); three height-shifted row BlockSpecs give the halo,
# horizontal taps are static in-kernel slices, weight stays VMEM-resident.
# --------------------------------------------------------------------------

def _make_conv3_kernel(act, has_shift, n_res, pre_relu):
    def kernel(*refs):
        it = iter(refs)
        rows = (next(it), next(it), next(it))       # 3 x (1,1,W+2,C)
        w_ref = next(it)                            # (9, C, Cout)
        t_ref = next(it) if has_shift else None     # (1, Cout)
        r1_ref = next(it) if n_res >= 1 else None   # (1,1,W,Cout)
        r2_ref = next(it) if n_res >= 2 else None
        o_ref = next(it)                            # (1,1,W,Cout)
        acc_ref = next(it)                          # (W, Cout) f32

        wo = o_ref.shape[2]
        for dy in range(3):
            for dx in range(3):
                a = rows[dy][0, 0, dx:dx + wo, :]
                if pre_relu:
                    a = jnp.maximum(a, 0)
                part = jnp.dot(a, w_ref[dy * 3 + dx],
                               preferred_element_type=jnp.float32)
                if dy == 0 and dx == 0:
                    acc_ref[...] = part
                else:
                    acc_ref[...] = acc_ref[...] + part

        y = acc_ref[...]
        if has_shift:
            y = y + t_ref[...]
        if n_res >= 1:
            y = y + r1_ref[0, 0].astype(jnp.float32)
        if n_res >= 2:
            y = y + r2_ref[0, 0].astype(jnp.float32)
        if act == "relu":
            y = jnp.maximum(y, 0.0)
        elif act == "sigmoid":
            y = 1.0 / (1.0 + jnp.exp(-y))
        o_ref[0, 0] = y.astype(o_ref.dtype)

    return kernel


@functools.partial(jax.jit, static_argnames=("act", "pre_relu"))
def conv3x3_direct(x, w9, bias=None, residual=None, residual2=None,
                   act=None, pre_relu=False):
    """3x3 / stride 1 / pad 1 conv (NHWC, bf16) with fused epilogue."""
    N, H, W, C = x.shape
    Cout = w9.shape[2]
    xp = jnp.pad(x.astype(jnp.bfloat16), ((0, 0), (1, 1), (1, 1), (0, 0)))
    Wp = W + 2

    operands = [xp, xp, xp, w9.astype(jnp.bfloat16)]
    in_specs = [
        pl.BlockSpec((1, 1, Wp, C), lambda n, y, dy=dy: (n, y + dy, 0, 0))
        for dy in range(3)
    ] + [pl.BlockSpec((9, C, Cout), lambda n, y: (0, 0, 0))]

    has_shift = bias is not None
    if has_shift:
        operands.append(bias.astype(jnp.float32).reshape(1, Cout))
        in_specs.append(pl.BlockSpec((1, Cout), lambda n, y: (0, 0)))

    n_res = 0
    for r in (residual, residual2):
        if r is not None:
            operands.append(r.astype(jnp.bfloat16))
            in_specs.append(
                pl.BlockSpec((1, 1, W, Cout), lambda n, y: (n, y, 0, 0)))
            n_res += 1

    kernel = _make_conv3_kernel(act, has_shift, n_res, pre_relu)

    return pl.pallas_call(
        kernel,
        out_shape=jax.ShapeDtypeStruct((N, H, W, Cout), jnp.bfloat16),
        grid_spec=pltpu.PrefetchScalarGridSpec(
            num_scalar_prefetch=0,
            grid=(N, H),
            in_specs=in_specs,
            out_specs=pl.BlockSpec((1, 1, W, Cout), lambda n, y: (n, y, 0, 0)),
            scratch_shapes=[pltpu.VMEM((W, Cout), jnp.float32)],
        ),
        compiler_params=pltpu.CompilerParams(
            dimension_semantics=("parallel", "parallel"),
            vmem_limit_bytes=VMEM_LIMIT_BYTES),
    )(*operands)


# --------------------------------------------------------------------------
# Direct grouped (ResNeXt 32x8d) 3x3 stride-1 conv kernel: per-tap
# block-diagonal super-groups, 128-lane channel blocks, fused BN + ReLU.
# --------------------------------------------------------------------------

def _gconv3_kernel(r0, r1, r2, w_ref, s_ref, t_ref, o_ref, acc_ref):
    rows = (r0, r1, r2)
    wo = o_ref.shape[2]
    for dy in range(3):
        for dx in range(3):
            a = rows[dy][0, 0, dx:dx + wo, :]
            part = jnp.dot(a, w_ref[0, dy * 3 + dx],
                           preferred_element_type=jnp.float32)
            if dy == 0 and dx == 0:
                acc_ref[...] = part
            else:
                acc_ref[...] = acc_ref[...] + part
    y = acc_ref[...] * s_ref[0] + t_ref[0]
    o_ref[0, 0] = jnp.maximum(y, 0.0).astype(o_ref.dtype)


@jax.jit
def grouped_conv3x3_direct(x, w_bd9, scale, shift):
    """x:(N,H,W,width), w_bd9:(S,9,128,128) per-tap block-diag super-groups."""
    N, H, W, C = x.shape
    S, _, CB, OB = w_bd9.shape
    assert S * CB == C and S * OB == C
    xp = jnp.pad(x.astype(jnp.bfloat16), ((0, 0), (1, 1), (1, 1), (0, 0)))
    Wp = W + 2

    s2 = scale.astype(jnp.float32).reshape(S, 1, OB)
    t2 = shift.astype(jnp.float32).reshape(S, 1, OB)

    in_specs = [
        pl.BlockSpec((1, 1, Wp, CB), lambda n, s, y, dy=dy: (n, y + dy, 0, s))
        for dy in range(3)
    ] + [
        pl.BlockSpec((1, 9, CB, OB), lambda n, s, y: (s, 0, 0, 0)),
        pl.BlockSpec((1, 1, OB), lambda n, s, y: (s, 0, 0)),
        pl.BlockSpec((1, 1, OB), lambda n, s, y: (s, 0, 0)),
    ]

    return pl.pallas_call(
        _gconv3_kernel,
        out_shape=jax.ShapeDtypeStruct((N, H, W, S * OB), jnp.bfloat16),
        grid_spec=pltpu.PrefetchScalarGridSpec(
            num_scalar_prefetch=0,
            grid=(N, S, H),
            in_specs=in_specs,
            out_specs=pl.BlockSpec((1, 1, W, OB), lambda n, s, y: (n, y, 0, s)),
            scratch_shapes=[pltpu.VMEM((W, OB), jnp.float32)],
        ),
        compiler_params=pltpu.CompilerParams(
            dimension_semantics=("parallel", "parallel", "parallel"),
            vmem_limit_bytes=VMEM_LIMIT_BYTES),
    )(xp, xp, xp, w_bd9.astype(jnp.bfloat16), s2, t2)


# --------------------------------------------------------------------------
# Grouped stride-2 conv (only the 3 transition blocks): im2col + block-diag.
# --------------------------------------------------------------------------

def _gmm_kernel(a_ref, b_ref, s_ref, t_ref, o_ref):
    y = jnp.dot(a_ref[...], b_ref[0], preferred_element_type=jnp.float32)
    y = y * s_ref[0] + t_ref[0]
    o_ref[...] = jnp.maximum(y, 0.0).astype(o_ref.dtype)


@jax.jit
def grouped_matmul_bd(a, b, scale, shift):
    """a:(M, S*Ksg) channel-major patches, b:(S, Ksg, 128) block-diag weights."""
    M, _ = a.shape
    S, Ksg, Nsg = b.shape
    assert Ksg % 128 == 0 and Nsg % 128 == 0
    tm = _rup(M, 16) if M <= 512 else 512
    Mp = _rup(M, tm)
    a_p = a.astype(jnp.bfloat16)
    if Mp != M:
        a_p = jnp.pad(a_p, ((0, Mp - M), (0, 0)))
    s_p = scale.astype(jnp.float32).reshape(S, 1, Nsg)
    t_p = shift.astype(jnp.float32).reshape(S, 1, Nsg)

    out = pl.pallas_call(
        _gmm_kernel,
        out_shape=jax.ShapeDtypeStruct((Mp, S * Nsg), jnp.bfloat16),
        grid_spec=pltpu.PrefetchScalarGridSpec(
            num_scalar_prefetch=0,
            grid=(S, Mp // tm),
            in_specs=[
                pl.BlockSpec((tm, Ksg), lambda s, i: (i, s)),
                pl.BlockSpec((1, Ksg, Nsg), lambda s, i: (s, 0, 0)),
                pl.BlockSpec((1, 1, Nsg), lambda s, i: (s, 0, 0)),
                pl.BlockSpec((1, 1, Nsg), lambda s, i: (s, 0, 0)),
            ],
            out_specs=pl.BlockSpec((tm, Nsg), lambda s, i: (i, s)),
        ),
        compiler_params=pltpu.CompilerParams(
            dimension_semantics=("parallel", "parallel"),
            vmem_limit_bytes=VMEM_LIMIT_BYTES),
    )(a_p, b.astype(jnp.bfloat16), s_p, t_p)
    return out[:M]


# --------------------------------------------------------------------------
# Tiled max-over-taps kernel (for the stem 3x3/s2 maxpool)
# --------------------------------------------------------------------------

def _max_taps_kernel(x_ref, o_ref):
    o_ref[...] = jnp.max(x_ref[...], axis=0)


@jax.jit
def max_over_taps(p):
    """p: (T, R, L) -> max over T, tiled over R, lane-dense L."""
    T, R, L = p.shape
    rp8 = _rup(R, 8)
    tr = rp8 if rp8 <= 1024 else 512
    Rp = _rup(R, tr)
    p_p = jnp.pad(p, ((0, 0), (0, Rp - R), (0, 0)))
    out = pl.pallas_call(
        _max_taps_kernel,
        out_shape=jax.ShapeDtypeStruct((Rp, L), p.dtype),
        grid_spec=pltpu.PrefetchScalarGridSpec(
            num_scalar_prefetch=0,
            grid=(Rp // tr,),
            in_specs=[pl.BlockSpec((T, tr, L), lambda i: (0, i, 0))],
            out_specs=pl.BlockSpec((tr, L), lambda i: (i, 0)),
        ),
        compiler_params=pltpu.CompilerParams(
            dimension_semantics=("parallel",),
            vmem_limit_bytes=VMEM_LIMIT_BYTES),
    )(p_p)
    return out[:R]


# --------------------------------------------------------------------------
# Conv / pool / upsample wrappers (glue feeding the Pallas kernels)
# --------------------------------------------------------------------------

def _im2col_taps(x, kh, kw, stride, padding, pad_value=0.0):
    N, H, W, C = x.shape
    if padding > 0:
        x = jnp.pad(x, ((0, 0), (padding, padding), (padding, padding), (0, 0)),
                    constant_values=pad_value)
    Ho = (H + 2 * padding - kh) // stride + 1
    Wo = (W + 2 * padding - kw) // stride + 1
    taps = []
    for dy in range(kh):
        for dx in range(kw):
            taps.append(x[:, dy:dy + stride * (Ho - 1) + 1:stride,
                          dx:dx + stride * (Wo - 1) + 1:stride, :])
    return taps, Ho, Wo


def conv2d(x, w, *, scale=None, shift=None, residual=None, residual2=None,
           stride=1, padding=0, act=None, pre_relu=False):
    """1x1 convs (direct matmul) and the 7x7 stem (im2col)."""
    N, H, W, C = x.shape
    KH, KW, Cin, Cout = w.shape
    if KH == 1 and KW == 1 and padding == 0:
        xs = x[:, ::stride, ::stride, :] if stride > 1 else x
        Ho, Wo = xs.shape[1], xs.shape[2]
        a = xs.reshape(N * Ho * Wo, Cin)
    else:
        taps, Ho, Wo = _im2col_taps(x, KH, KW, stride, padding)
        a = jnp.concatenate(taps, axis=-1).reshape(N * Ho * Wo, KH * KW * Cin)
    b = w.reshape(KH * KW * Cin, Cout)
    r1 = residual.reshape(-1, Cout) if residual is not None else None
    r2 = residual2.reshape(-1, Cout) if residual2 is not None else None
    y = matmul_fused(a, b, scale=scale, shift=shift, residual=r1, residual2=r2,
                     act=act, pre_relu=pre_relu)
    return y.reshape(N, Ho, Wo, Cout)


def grouped_conv2d_s2(x, w_bd, scale, shift):
    """ResNeXt grouped 3x3 stride-2 conv + BN + ReLU (im2col, 3 layers only)."""
    N, H, W, C = x.shape
    taps, Ho, Wo = _im2col_taps(x, 3, 3, 2, 1)
    p = jnp.stack(taps, axis=-1)                     # (N,Ho,Wo,C,9)
    a = p.reshape(N * Ho * Wo, C * 9)
    y = grouped_matmul_bd(a, w_bd, scale, shift)
    return y.reshape(N, Ho, Wo, -1)


def maxpool_3x3_s2(x):
    N, H, W, C = x.shape
    taps, Ho, Wo = _im2col_taps(x, 3, 3, 2, 1, pad_value=-1e30)
    stacked = jnp.stack(taps, axis=0)                # (9, N, Ho, Wo, C)
    total = N * Ho * Wo * C
    if total % 128 == 0:
        p = stacked.reshape(9, total // 128, 128)    # lane-dense
    else:
        p = stacked.reshape(9, N * Ho * Wo, C)
    y = max_over_taps(p)
    return y.reshape(N, Ho, Wo, C)


def _resize_matrix(n_in, n_out, align_corners):
    R = np.zeros((n_out, n_in), np.float32)
    for o in range(n_out):
        if align_corners:
            src = 0.0 if n_out == 1 else o * (n_in - 1) / (n_out - 1)
        else:
            src = (o + 0.5) * (n_in / n_out) - 0.5
            src = max(src, 0.0)
        src = min(src, n_in - 1)
        lo = int(math.floor(src))
        hi = min(lo + 1, n_in - 1)
        f = src - lo
        R[o, lo] += 1.0 - f
        R[o, hi] += f
    return jnp.asarray(R)


def upsample2x(x, align_corners):
    """Bilinear x2 upsampling as two separable (bf16, whole-K) matmuls."""
    N, H, W, C = x.shape
    Ry = _resize_matrix(H, 2 * H, align_corners)
    Rx = _resize_matrix(W, 2 * W, align_corners)
    xt = x.transpose(1, 0, 2, 3).reshape(H, N * W * C)
    t = matmul_fused(Ry, xt)
    t = t.reshape(2 * H, N, W, C).transpose(1, 0, 2, 3)      # (N, 2H, W, C)
    xt2 = t.transpose(2, 0, 1, 3).reshape(W, N * 2 * H * C)
    u = matmul_fused(Rx, xt2)
    return u.reshape(2 * W, N, 2 * H, C).transpose(1, 2, 0, 3)


# --------------------------------------------------------------------------
# Deterministic synthetic parameters (pre-packed bf16 / kernel-ready layouts)
# --------------------------------------------------------------------------

class KeyGen:
    def __init__(self, seed):
        self._key = jax.random.PRNGKey(seed)

    def __call__(self):
        self._key, sub = jax.random.split(self._key)
        return sub


def _init_conv(kg, kh, kw, cin, cout):
    std = 0.5 * math.sqrt(2.0 / (kh * kw * cin))
    return std * jax.random.normal(kg(), (kh, kw, cin, cout), jnp.float32)


def _init_gconv(kg, g, kh, kw, cin_g, cout_g):
    std = 0.5 * math.sqrt(2.0 / (kh * kw * cin_g))
    return std * jax.random.normal(kg(), (g, kh, kw, cin_g, cout_g), jnp.float32)


def _init_bias(kg, n, fan_in):
    bnd = 1.0 / math.sqrt(fan_in)
    return jax.random.uniform(kg(), (n,), jnp.float32, -bnd, bnd)


def _bn_affine(c):
    scale = jnp.full((c,), 1.0 / math.sqrt(1.0 + BN_EPS), jnp.float32)
    shift = jnp.zeros((c,), jnp.float32)
    return scale, shift


def _make_blockdiag_gconv(w):
    """(G,3,3,Cg,Og) -> (S, SG*Cg*9, SG*Og) channel-major block-diag (s2 path)."""
    G, KH, KW, Cg, Og = w.shape
    SG = max(1, 128 // Og)
    S = G // SG
    assert S * SG == G and SG * Og == 128
    Kg = Cg * KH * KW
    wg = jnp.transpose(w, (0, 3, 1, 2, 4)).reshape(G, Kg, Og)   # k = c*9 + tap
    wg = wg.reshape(S, SG, Kg, Og)
    eye = jnp.eye(SG, dtype=w.dtype)
    bd = jnp.einsum("sgko,gh->sgkho", wg, eye)
    return bd.reshape(S, SG * Kg, SG * Og).astype(jnp.bfloat16)


def _make_blockdiag_gconv_taps(w):
    """(G,3,3,Cg,Og) -> (S, 9, SG*Cg, SG*Og) per-tap block-diag (direct path)."""
    G, KH, KW, Cg, Og = w.shape
    SG = max(1, 128 // Og)
    S = G // SG
    assert S * SG == G and SG * Og == 128
    wt = jnp.transpose(w, (1, 2, 0, 3, 4)).reshape(KH * KW, S, SG, Cg, Og)
    eye = jnp.eye(SG, dtype=w.dtype)
    bd = jnp.einsum("tsgio,gh->tsgiho", wt, eye)
    bd = bd.reshape(KH * KW, S, SG * Cg, SG * Og)
    return jnp.transpose(bd, (1, 0, 2, 3)).astype(jnp.bfloat16)


def _w9(w):
    """(3,3,Cin,Cout) f32 -> (9,Cin,Cout) bf16 for the direct 3x3 kernel."""
    kh, kw, cin, cout = w.shape
    return w.reshape(kh * kw, cin, cout).astype(jnp.bfloat16)


def make_params(seed=1, features=FEATURES):
    kg = KeyGen(seed)
    P = {}
    P["conv1"] = _init_conv(kg, 7, 7, 3, 64).astype(jnp.bfloat16)
    P["bn1"] = _bn_affine(64)

    def bottleneck_params(inplanes, planes, stride, groups=32, base_width=8):
        width = int(planes * (base_width / 64.0)) * groups
        outp = planes * 4
        p = {"stride": stride}
        p["w1"] = _init_conv(kg, 1, 1, inplanes, width).astype(jnp.bfloat16)
        p["s1"], p["t1"] = _bn_affine(width)
        w2 = _init_gconv(kg, groups, 3, 3, width // groups, width // groups)
        if stride == 1:
            p["w2t"] = _make_blockdiag_gconv_taps(w2)
        else:
            p["w2bd"] = _make_blockdiag_gconv(w2)
        p["s2"], p["t2"] = _bn_affine(width)
        p["w3"] = _init_conv(kg, 1, 1, width, outp).astype(jnp.bfloat16)
        p["s3"], p["t3"] = _bn_affine(outp)
        if stride != 1 or inplanes != outp:
            p["wd"] = _init_conv(kg, 1, 1, inplanes, outp).astype(jnp.bfloat16)
            p["sd"], p["td"] = _bn_affine(outp)
        return p

    def make_layer(inplanes, planes, blocks, stride):
        ps = [bottleneck_params(inplanes, planes, stride)]
        for _ in range(blocks - 1):
            ps.append(bottleneck_params(planes * 4, planes, 1))
        return ps

    # ResNeXt101_32x8d: layers = [3, 4, 23, 3]
    P["layer1"] = make_layer(64, 64, 3, 1)
    P["layer2"] = make_layer(256, 128, 4, 2)
    P["layer3"] = make_layer(512, 256, 23, 2)
    P["layer4"] = make_layer(1024, 512, 3, 2)

    for i, cin in enumerate([256, 512, 1024, 2048], start=1):
        P[f"layer{i}_rn"] = _w9(_init_conv(kg, 3, 3, cin, features))

    def rcu_params():
        return {
            "w1": _w9(_init_conv(kg, 3, 3, features, features)),
            "b1": _init_bias(kg, features, 9 * features),
            "w2": _w9(_init_conv(kg, 3, 3, features, features)),
            "b2": _init_bias(kg, features, 9 * features),
        }

    for i in (4, 3, 2, 1):
        P[f"refinenet{i}"] = {"rcu1": rcu_params(), "rcu2": rcu_params()}

    P["oc1_w"] = _w9(_init_conv(kg, 3, 3, features, 128))
    P["oc1_b"] = _init_bias(kg, 128, 9 * features)
    P["oc2_w"] = _w9(_init_conv(kg, 3, 3, 128, 32))
    P["oc2_b"] = _init_bias(kg, 32, 9 * 128)
    P["oc3_w"] = _init_conv(kg, 1, 1, 32, 7).astype(jnp.bfloat16)
    P["oc3_b"] = _init_bias(kg, 7, 32)
    return P


# --------------------------------------------------------------------------
# Forward pass
# --------------------------------------------------------------------------

def _bottleneck_forward(x, p):
    out = conv2d(x, p["w1"], scale=p["s1"], shift=p["t1"], act="relu")
    if p["stride"] == 1:
        out = grouped_conv3x3_direct(out, p["w2t"], p["s2"], p["t2"])
    else:
        out = grouped_conv2d_s2(out, p["w2bd"], p["s2"], p["t2"])
    if "wd" in p:
        identity = conv2d(x, p["wd"], scale=p["sd"], shift=p["td"],
                          stride=p["stride"])
    else:
        identity = x
    # conv3 + BN + residual add + ReLU fused into one kernel epilogue
    return conv2d(out, p["w3"], scale=p["s3"], shift=p["t3"],
                  residual=identity, act="relu")


def _rcu_forward(x, p, extra_residual=None):
    # relu(x) folded into conv1's A operand (pre_relu); skip adds fused into
    # conv2's epilogue.
    out = conv3x3_direct(x, p["w1"], bias=p["b1"], act="relu", pre_relu=True)
    out = conv3x3_direct(out, p["w2"], bias=p["b2"],
                         residual=x, residual2=extra_residual)
    return out


def _ffb_forward(p, x0, x1=None):
    if x1 is not None:
        out = _rcu_forward(x1, p["rcu1"], extra_residual=x0)
    else:
        out = x0
    out = _rcu_forward(out, p["rcu2"])
    return upsample2x(out, align_corners=True)


def midasnet_forward(P, x_nchw):
    x = jnp.transpose(x_nchw, (0, 2, 3, 1)).astype(jnp.bfloat16)  # NCHW->NHWC

    # pretrained.layer1 = conv1 + bn1 + relu + maxpool + resnet.layer1
    y = conv2d(x, P["conv1"], scale=P["bn1"][0], shift=P["bn1"][1],
               stride=2, padding=3, act="relu")
    y = maxpool_3x3_s2(y)
    for p in P["layer1"]:
        y = _bottleneck_forward(y, p)
    layer_1 = y
    for p in P["layer2"]:
        y = _bottleneck_forward(y, p)
    layer_2 = y
    for p in P["layer3"]:
        y = _bottleneck_forward(y, p)
    layer_3 = y
    for p in P["layer4"]:
        y = _bottleneck_forward(y, p)
    layer_4 = y

    layer_1_rn = conv3x3_direct(layer_1, P["layer1_rn"])
    layer_2_rn = conv3x3_direct(layer_2, P["layer2_rn"])
    layer_3_rn = conv3x3_direct(layer_3, P["layer3_rn"])
    layer_4_rn = conv3x3_direct(layer_4, P["layer4_rn"])

    path_4 = _ffb_forward(P["refinenet4"], layer_4_rn)
    path_3 = _ffb_forward(P["refinenet3"], path_4, layer_3_rn)
    path_2 = _ffb_forward(P["refinenet2"], path_3, layer_2_rn)
    path_1 = _ffb_forward(P["refinenet1"], path_2, layer_1_rn)

    out = conv3x3_direct(path_1, P["oc1_w"], bias=P["oc1_b"])
    out = upsample2x(out, align_corners=False)
    out = conv3x3_direct(out, P["oc2_w"], bias=P["oc2_b"], act="relu")
    out = conv2d(out, P["oc3_w"], shift=P["oc3_b"], act="sigmoid")

    return jnp.transpose(out, (0, 3, 1, 2)).astype(jnp.float32)  # (N,7,H,W)


if __name__ == "__main__":
    params = make_params(seed=1)
    x = jax.random.normal(jax.random.PRNGKey(0), (1, 3, 32, 32), jnp.float32)
    out = midasnet_forward(params, x)
    out = jax.block_until_ready(out)
    assert out.shape == (1, 7, 32, 32), out.shape
    assert bool(jnp.all(jnp.isfinite(out))), "non-finite output"
    print("KERNEL_OK")
</pallas_src>

<mosaic_0001>
module attributes {stable_mosaic.version = 11 : i64} {
  func.func @kernel(%arg0: i32, %arg1: i32, %arg2: memref<128x147xbf16, #tpu.memory_space<vmem>>, %arg3: memref<147x128xbf16, #tpu.memory_space<vmem>>, %arg4: memref<1x128xf32, #tpu.memory_space<vmem>>, %arg5: memref<1x128xf32, #tpu.memory_space<vmem>>, %arg6: memref<128x128xbf16, #tpu.memory_space<vmem>>) attributes {dimension_semantics = [#tpu.dimension_semantics<parallel>, #tpu.dimension_semantics<parallel>], iteration_bounds = array<i64: 2, 1>, scalar_prefetch = 0 : i64, scratch_operands = 0 : i64, tpu.core_type = #tpu.core_type<tc>, window_params = [{transform_indices = @transform_0, window_bounds = array<i64: 128, 147>}, {transform_indices = @transform_1, window_bounds = array<i64: 147, 128>}, {transform_indices = @transform_2, window_bounds = array<i64: 1, 128>}, {transform_indices = @transform_3, window_bounds = array<i64: 1, 128>}, {transform_indices = @transform_4, window_bounds = array<i64: 128, 128>}]} {
    %c0 = arith.constant 0 : index
    %c0_0 = arith.constant 0 : index
    %0 = vector.load %arg2[%c0, %c0_0] : memref<128x147xbf16, #tpu.memory_space<vmem>>, vector<128x147xbf16>
    %c0_1 = arith.constant 0 : index
    %c0_2 = arith.constant 0 : index
    %1 = vector.load %arg3[%c0_1, %c0_2] : memref<147x128xbf16, #tpu.memory_space<vmem>>, vector<147x128xbf16>
    %cst = arith.constant dense<0.000000e+00> : vector<128x128xf32>
    %2 = tpu.matmul %0, %1, %cst {dimension_numbers = #tpu.dot_dimension_numbers<[1], [0], [0], [1], [0, 0, 1, 1], [], []>} : vector<128x147xbf16>, vector<147x128xbf16>, vector<128x128xf32> -> vector<128x128xf32>
    %c0_3 = arith.constant 0 : index
    %c0_4 = arith.constant 0 : index
    %3 = vector.load %arg4[%c0_3, %c0_4] : memref<1x128xf32, #tpu.memory_space<vmem>>, vector<1x128xf32>
    %4 = vector.broadcast %3 : vector<1x128xf32> to vector<128x128xf32>
    %5 = arith.mulf %2, %4 : vector<128x128xf32>
    %c0_5 = arith.constant 0 : index
    %c0_6 = arith.constant 0 : index
    %6 = vector.load %arg5[%c0_5, %c0_6] : memref<1x128xf32, #tpu.memory_space<vmem>>, vector<1x128xf32>
    %7 = vector.broadcast %6 : vector<1x128xf32> to vector<128x128xf32>
    %8 = arith.addf %5, %7 : vector<128x128xf32>
    %cst_7 = arith.constant 0.000000e+00 : f32
    %9 = vector.broadcast %cst_7 : f32 to vector<128x128xf32>
    %10 = arith.maximumf %8, %9 : vector<128x128xf32>
    %11 = arith.truncf %10 : vector<128x128xf32> to vector<128x128xbf16>
    %c0_8 = arith.constant 0 : index
    %c0_9 = arith.constant 0 : index
    %12 = vector.load %arg6[%c0_8, %c0_9] : memref<128x128xbf16, #tpu.memory_space<vmem>>, vector<128x128xbf16>
    tpu.vector_store %arg6[%c0_8, %c0_9], %11 {strides = array<i32>} : memref<128x128xbf16, #tpu.memory_space<vmem>>, vector<128x128xbf16>,
    return
  }
  func.func @transform_0(%arg0: i32, %arg1: i32) -> (i32, i32) {
    %c0_i32 = arith.constant 0 : i32
    %c0_i32_0 = arith.constant 0 : i32
    return %arg0, %c0_i32 : i32, i32
  }
  func.func @transform_1(%arg0: i32, %arg1: i32) -> (i32, i32) {
    %c0_i32 = arith.constant 0 : i32
    %c0_i32_0 = arith.constant 0 : i32
    return %c0_i32, %arg1 : i32, i32
  }
  func.func @transform_2(%arg0: i32, %arg1: i32) -> (i32, i32) {
    %c0_i32 = arith.constant 0 : i32
    %c0_i32_0 = arith.constant 0 : i32
    return %c0_i32, %arg1 : i32, i32
  }
  func.func @transform_3(%arg0: i32, %arg1: i32) -> (i32, i32) {
    %c0_i32 = arith.constant 0 : i32
    %c0_i32_0 = arith.constant 0 : i32
    return %c0_i32, %arg1 : i32, i32
  }
  func.func @transform_4(%arg0: i32, %arg1: i32) -> (i32, i32) {
    %c0_i32 = arith.constant 0 : i32
    return %arg0, %arg1 : i32, i32
  }
}

</mosaic_0001>

<llo_original>
// kernel: matmul_fused.1
$region0: #{matmul_fused.1}
  #allocation0 [shape = 'u32[]', space=smem, size = 0x4, offset = 0x4, fixed_abs, tag = 'smem constant byte address 0x4 - core index']
  #allocation1 [shape = 'u32[144,128]{1,0:T(1,128)}', space=vmem, size = 0x12000, scoped, tag = 'internal scratch']
  %s0 = inlined_call_operand.vmem [shape: bf16[256,147], index: 0, kind: input, shape index: {}]
  %s1 = inlined_call_operand.vmem [shape: bf16[147,128], index: 1, kind: input, shape index: {}]
  %s2 = inlined_call_operand.vmem [shape: f32[1,128], index: 2, kind: input, shape index: {}]
  %s3 = inlined_call_operand.vmem [shape: f32[1,128], index: 3, kind: input, shape index: {}]
  %s4 = inlined_call_operand.vmem [shape: bf16[256,128], index: 4, kind: output, shape index: {}]
  %s5 = sld [smem:[#allocation0]]
  $region49: #{matmul_fused.1} parent=0
    _
  %s7 = ssub.s32 1, %s5
  %s8 = scalar_select 0, %s7, %s5
  loop: start=0, step=1, limit=4
  $region2: #{matmul_fused.1} parent=0 // loop_pre_header
    _
  $region3: #{matmul_fused.1} parent=0 // loop_header
    %s10 = sphi 0, %s14
    %p11 = scmp.ge.s32.totalorder %s10, 4
    %s17 = sphi 0, %s29
    %s18 = sphi 0, %s25
    %s19 = sphi 0, %s17
    %s20 = sphi 0, %s18
    %s21 = sphi 0, %s19
    %s22 = sphi 0, %s20
    %s32 = sphi 0, %s34
    %s35 = sphi 0, %s32
    %s36 = sphi 0, %s35
    %s52 = sphi 0, %s36
    %s58 = sphi 0, %s60
    %s61 = sphi 0, %s58
    %s62 = sphi 0, %s61
    %s78 = sphi 0, %s62
    %s84 = sphi 0, %s86
    %s87 = sphi 0, %s84
    %s88 = sphi 0, %s87
    %s104 = sphi 0, %s88
    %s110 = sphi 0, %s112
    %s113 = sphi 0, %s110
    %s114 = sphi 0, %s113
    %s130 = sphi 0, %s114
    %s138 = sphi 0, %s140
    %s141 = sphi 0, %s138
    %s142 = sphi 0, %s141
    %s158 = sphi 0, %s142
  $region4: #{matmul_fused.1} parent=0 // loop_header_branch
    %13 = sbr.rel (%p11) target = $region8
  $region5: #{matmul_fused.1} parent=0 // loop_body
    %s15 = ssub.s32 %s10, 1
    %s16 = ssub.s32 %s10, 2
    %s23 = sadd.s32 1, %s18
    %p24 = scmp.ge.s32.totalorder %s23, 1
    %s25 = scalar_select %p24, 0, %s23
    %s26 = sadd.s32 1, %s17
    %s27 = scalar_select %p24, %s26, %s17
    %p28 = scmp.ge.s32.totalorder %s27, 2
    %s29 = scalar_select %p28, 0, %s27
    %s30 = ssub.s32 %s17, %s29
    %p31 = scmp.eq.s32.totalorder %s30, 0
    %s33 = sadd.s32 %s32, 1
    %s34 = scalar_select %p31, %s32, %s33
    %p37 = pneg %p31
    %p38 = scmp.eq.s32.totalorder %s10, 1
    %p39 = por %p37, %p38
    %p40 = scmp.ne.s32.totalorder %s32, %s35
    %p41 = scmp.eq.s32.totalorder %s10, 0
    %p42 = por %p40, %p41
    %p43 = scmp.ne.s32.totalorder %s32, %s35
    %p44 = scmp.eq.s32.totalorder %s15, 1
    %p45 = por %p43, %p44
    %p46 = scmp.ne.s32.totalorder %s35, %s36
    %p47 = scmp.eq.s32.totalorder %s15, 0
    %p48 = por %p46, %p47
    %p49 = scmp.ne.s32.totalorder %s35, %s36
    %p50 = scmp.eq.s32.totalorder %s16, 1
    %p51 = por %p49, %p50
    %p53 = scmp.ne.s32.totalorder %s36, %s52
    %p54 = scmp.eq.s32.totalorder %s16, 0
    %p55 = por %p53, %p54
    %s56 = ssub.s32 %s18, %s25
    %p57 = scmp.eq.s32.totalorder %s56, 0
    %s59 = sadd.s32 %s58, 1
    %s60 = scalar_select %p57, %s58, %s59
    %p63 = pneg %p57
    %p64 = scmp.eq.s32.totalorder %s10, 1
    %p65 = por %p63, %p64
    %p66 = scmp.ne.s32.totalorder %s58, %s61
    %p67 = scmp.eq.s32.totalorder %s10, 0
    %p68 = por %p66, %p67
    %p69 = scmp.ne.s32.totalorder %s58, %s61
    %p70 = scmp.eq.s32.totalorder %s15, 1
    %p71 = por %p69, %p70
    %p72 = scmp.ne.s32.totalorder %s61, %s62
    %p73 = scmp.eq.s32.totalorder %s15, 0
    %p74 = por %p72, %p73
    %p75 = scmp.ne.s32.totalorder %s61, %s62
    %p76 = scmp.eq.s32.totalorder %s16, 1
    %p77 = por %p75, %p76
    %p79 = scmp.ne.s32.totalorder %s62, %s78
    %p80 = scmp.eq.s32.totalorder %s16, 0
    %p81 = por %p79, %p80
    %s82 = ssub.s32 %s18, %s25
    %p83 = scmp.eq.s32.totalorder %s82, 0
    %s85 = sadd.s32 %s84, 1
    %s86 = scalar_select %p83, %s84, %s85
    %p89 = pneg %p83
    %p90 = scmp.eq.s32.totalorder %s10, 1
    %p91 = por %p89, %p90
    %p92 = scmp.ne.s32.totalorder %s84, %s87
    %p93 = scmp.eq.s32.totalorder %s10, 0
    %p94 = por %p92, %p93
    %p95 = scmp.ne.s32.totalorder %s84, %s87
    %p96 = scmp.eq.s32.totalorder %s15, 1
    %p97 = por %p95, %p96
    %p98 = scmp.ne.s32.totalorder %s87, %s88
    %p99 = scmp.eq.s32.totalorder %s15, 0
    %p100 = por %p98, %p99
    %p101 = scmp.ne.s32.totalorder %s87, %s88
    %p102 = scmp.eq.s32.totalorder %s16, 1
    %p103 = por %p101, %p102
    %p105 = scmp.ne.s32.totalorder %s88, %s104
    %p106 = scmp.eq.s32.totalorder %s16, 0
    %p107 = por %p105, %p106
    %s108 = ssub.s32 %s18, %s25
    %p109 = scmp.eq.s32.totalorder %s108, 0
    %s111 = sadd.s32 %s110, 1
    %s112 = scalar_select %p109, %s110, %s111
    %p115 = pneg %p109
    %p116 = scmp.eq.s32.totalorder %s10, 1
    %p117 = por %p115, %p116
    %p118 = scmp.ne.s32.totalorder %s110, %s113
    %p119 = scmp.eq.s32.totalorder %s10, 0
    %p120 = por %p118, %p119
    %p121 = scmp.ne.s32.totalorder %s110, %s113
    %p122 = scmp.eq.s32.totalorder %s15, 1
    %p123 = por %p121, %p122
    %p124 = scmp.ne.s32.totalorder %s113, %s114
    %p125 = scmp.eq.s32.totalorder %s15, 0
    %p126 = por %p124, %p125
    %p127 = scmp.ne.s32.totalorder %s113, %s114
    %p128 = scmp.eq.s32.totalorder %s16, 1
    %p129 = por %p127, %p128
    %p131 = scmp.ne.s32.totalorder %s114, %s130
    %p132 = scmp.eq.s32.totalorder %s16, 0
    %p133 = por %p131, %p132
    %s134 = ssub.s32 %s17, %s29
    %s135 = ssub.s32 %s18, %s25
    %s136 = sor.u32 %s134, %s135
    %p137 = scmp.eq.s32.totalorder %s136, 0
    %s139 = sadd.s32 %s138, 1
    %s140 = scalar_select %p137, %s138, %s139
    %p143 = pneg %p137
    %p144 = scmp.eq.s32.totalorder %s10, 1
    %p145 = por %p143, %p144
    %p146 = scmp.ne.s32.totalorder %s138, %s141
    %p147 = scmp.eq.s32.totalorder %s10, 0
    %p148 = por %p146, %p147
    %p149 = scmp.ne.s32.totalorder %s138, %s141
    %p150 = scmp.eq.s32.totalorder %s15, 1
    %p151 = por %p149, %p150
    %p152 = scmp.ne.s32.totalorder %s141, %s142
    %p153 = scmp.eq.s32.totalorder %s15, 0
    %p154 = por %p152, %p153
    %p155 = scmp.ne.s32.totalorder %s141, %s142
    %p156 = scmp.eq.s32.totalorder %s16, 1
    %p157 = por %p155, %p156
    %p159 = scmp.ne.s32.totalorder %s142, %s158
    %p160 = scmp.eq.s32.totalorder %s16, 0
    %p161 = por %p159, %p160
    %p162 = scmp.le.s32.totalorder 1, %s10
    %p163 = scmp.lt.s32.totalorder %s10, 3
    %p164 = pnand %p162, %p163
    %p165 = pneg %p164
    // Predicated region
    $region9: #{matmul_fused.1} parent=5 // pred_check
      _
    $region10: #{matmul_fused.1} parent=5 // pred_check_branch
      %167 = sbr.rel (%p164) target = $region12
    $region11: #{matmul_fused.1} parent=5 // pred_region
      %s168 = ssub.s32 %s10, 1
      // Predicated region
      $region13: #{matmul_fused.1} parent=11 // pred_check
        %p169 = pneg %p74
      $region14: #{matmul_fused.1} parent=11 // pred_check_branch
        %171 = sbr.rel (%p169) target = $region16
      $region15: #{matmul_fused.1} parent=11 // pred_region
        %p172 = scmp.lt.s32.totalorder %s20, 0
        %s173 = scalar_select %p172, %s20, 0
        %s174 = smul.addr %s173, 4
        %s175 = scalar_lea.vmem %s1, %s174
      $region16: #{matmul_fused.1} parent=11 // pred_fallthru
        _
      // Predicated region
      $region17: #{matmul_fused.1} parent=11 // pred_check
        %p176 = pneg %p100
      $region18: #{matmul_fused.1} parent=11 // pred_check_branch
        %178 = sbr.rel (%p176) target = $region20
      $region19: #{matmul_fused.1} parent=11 // pred_region
        %p179 = scmp.lt.s32.totalorder %s20, 0
        %s180 = scalar_select %p179, %s20, 0
        %s181 = scalar_lea.vmem %s2, %s180
      $region20: #{matmul_fused.1} parent=11 // pred_fallthru
        _
      // Predicated region
      $region21: #{matmul_fused.1} parent=11 // pred_check
        %p182 = pneg %p126
      $region22: #{matmul_fused.1} parent=11 // pred_check_branch
        %184 = sbr.rel (%p182) target = $region24
      $region23: #{matmul_fused.1} parent=11 // pred_region
        %p185 = scmp.lt.s32.totalorder %s20, 0
        %s186 = scalar_select %p185, %s20, 0
        %s187 = scalar_lea.vmem %s3, %s186
      $region24: #{matmul_fused.1} parent=11 // pred_fallthru
        _
    $region12: #{matmul_fused.1} parent=5 // pred_fallthru
      _
    %p188 = scmp.lt.s32.totalorder %s10, 2
    // Predicated region
    $region25: #{matmul_fused.1} parent=5 // pred_check
      %p189 = pneg %p188
    $region26: #{matmul_fused.1} parent=5 // pred_check_branch
      %191 = sbr.rel (%p189) target = $region28
    $region27: #{matmul_fused.1} parent=5 // pred_region
      // Predicated region
      $region29: #{matmul_fused.1} parent=27 // pred_check
        %p192 = pneg %p42
      $region30: #{matmul_fused.1} parent=27 // pred_check_branch
        %194 = sbr.rel (%p192) target = $region32
      $region31: #{matmul_fused.1} parent=27 // pred_region
        %s195 = smul.u32 16, %s17
        %p196 = scmp.lt.s32.totalorder %s195, 31
        %s197 = scalar_select %p196, %s195, 31
        %s198 = smul.addr %s197, 2
        %s199 = smul.addr %s198, 4
        %s200 = scalar_lea.vmem %s0, %s199
        %s201 = smul.u32 16, %s17
      $region32: #{matmul_fused.1} parent=27 // pred_fallthru
        _
    $region28: #{matmul_fused.1} parent=5 // pred_fallthru
      _
    %p202 = scmp.le.s32.totalorder 1, %s10
    %p203 = scmp.lt.s32.totalorder %s10, 3
    %p204 = pnand %p202, %p203
    %p205 = pneg %p204
    // Predicated region
    $region33: #{matmul_fused.1} parent=5 // pred_check
      _
    $region34: #{matmul_fused.1} parent=5 // pred_check_branch
      %207 = sbr.rel (%p204) target = $region36
    $region35: #{matmul_fused.1} parent=5 // pred_region
      %s208 = ssub.s32 %s10, 1
      %s209 = smul.u32 16, %s19
      %p210 = scmp.lt.s32.totalorder %s209, 31
      %s211 = scalar_select %p210, %s209, 31
      %s212 = smul.addr %s211, 2
      %s213 = smul.addr %s212, 4
      %s214 = scalar_lea.vmem %s0, %s213
      %p215 = pneg %p48
      %p216 = pneg %p45
      %p217 = scmp.lt.s32.totalorder %s20, 0
      %s218 = scalar_select %p217, %s20, 0
      %s219 = smul.addr %s218, 4
      %s220 = scalar_lea.vmem %s1, %s219
      %p221 = pneg %p74
      %p222 = pneg %p71
      %p223 = scmp.lt.s32.totalorder %s20, 0
      %s224 = scalar_select %p223, %s20, 0
      %s225 = scalar_lea.vmem %s2, %s224
      %p226 = pneg %p100
      %p227 = pneg %p97
      %p228 = scmp.lt.s32.totalorder %s20, 0
      %s229 = scalar_select %p228, %s20, 0
      %s230 = scalar_lea.vmem %s3, %s229
      %p231 = pneg %p126
      %p232 = pneg %p123
      %p233 = pneg %p154
      %p234 = pneg %p151
      %s235 = smul.u32 16, %s19
      %p236 = scmp.lt.s32.totalorder %s235, 31
      %s237 = scalar_select %p236, %s235, 31
      %p238 = scmp.lt.s32.totalorder %s20, 0
      %s239 = scalar_select %p238, %s20, 0
      %s240 = sadd.s32 %s239, %s237
      %s241 = smul.addr %s240, 4
      %s242 = scalar_lea.vmem %s4, %s241
      %s243 = smul.u32 16, %s19
      %p244 = scmp.lt.s32.totalorder %s243, 31
      %s245 = scalar_select %p244, %s243, 31
      %s246 = smul.addr %s245, 2
      %s247 = smul.addr %s246, 4
      %s248 = scalar_lea.vmem %s0, %s247
      %s249 = smul.u32 16, %s19
      %p250 = scmp.lt.s32.totalorder %s20, 0
      %s251 = scalar_select %p250, %s20, 0
      %s252 = smul.addr %s251, 4
      %s253 = scalar_lea.vmem %s1, %s252
      %p254 = scmp.lt.s32.totalorder %s20, 0
      %s255 = scalar_select %p254, %s20, 0
      %s256 = scalar_lea.vmem %s2, %s255
      %p257 = scmp.lt.s32.totalorder %s20, 0
      %s258 = scalar_select %p257, %s20, 0
      %s259 = scalar_lea.vmem %s3, %s258
      %s260 = smul.u32 16, %s19
      %p261 = scmp.lt.s32.totalorder %s260, 31
      %s262 = scalar_select %p261, %s260, 31
      %p263 = scmp.lt.s32.totalorder %s20, 0
      %s264 = scalar_select %p263, %s20, 0
      %s265 = sadd.s32 %s264, %s262
      %s266 = smul.addr %s265, 4
      %s267 = scalar_lea.vmem %s4, %s266
      %s268 = smul.u32 16, %s19
      %v270 = vld [vmem:[%s248] sm:$0xff]
      %v271 = vld [vmem:[%s248 + $0x8] sm:$0xff]
      %v272 = vld [vmem:[%s248 + $0x10] sm:$0xff]
      %v273 = vld [vmem:[%s248 + $0x18] sm:$0xff]
      %v274 = vld [vmem:[%s248 + $0x20] sm:$0xff]
      %v275 = vld [vmem:[%s248 + $0x28] sm:$0xff]
      %v276 = vld [vmem:[%s248 + $0x30] sm:$0xff]
      %v277 = vld [vmem:[%s248 + $0x38] sm:$0xff]
      %v278 = vld [vmem:[%s248 + $0x40] sm:$0xff]
      %v279 = vld [vmem:[%s248 + $0x48] sm:$0xff]
      %v280 = vld [vmem:[%s248 + $0x50] sm:$0xff]
      %v281 = vld [vmem:[%s248 + $0x58] sm:$0xff]
      %v282 = vld [vmem:[%s248 + $0x60] sm:$0xff]
      %v283 = vld [vmem:[%s248 + $0x68] sm:$0xff]
      %v284 = vld [vmem:[%s248 + $0x70] sm:$0xff]
      %v285 = vld [vmem:[%s248 + $0x78] sm:$0xff]
      %v286 = vld [vmem:[%s253] sm:$0xf]
      %v287 = vld [vmem:[%s253 + $0x4] sm:$0xf]
      %v288 = vld [vmem:[%s253 + $0x8] sm:$0xf]
      %v289 = vld [vmem:[%s253 + $0xc] sm:$0xf]
      %v290 = vld [vmem:[%s253 + $0x10] sm:$0xf]
      %v291 = vld [vmem:[%s253 + $0x14] sm:$0xf]
      %v292 = vld [vmem:[%s253 + $0x18] sm:$0xf]
      %v293 = vld [vmem:[%s253 + $0x1c] sm:$0xf]
      %v294 = vld [vmem:[%s253 + $0x20] sm:$0xf]
      %v295 = vld [vmem:[%s253 + $0x24] sm:$0xf]
      %v296 = vld [vmem:[%s253 + $0x28] sm:$0xf]
      %v297 = vld [vmem:[%s253 + $0x2c] sm:$0xf]
      %v298 = vld [vmem:[%s253 + $0x30] sm:$0xf]
      %v299 = vld [vmem:[%s253 + $0x34] sm:$0xf]
      %v300 = vld [vmem:[%s253 + $0x38] sm:$0xf]
      %v301 = vld [vmem:[%s253 + $0x3c] sm:$0xf]
      %v302 = vld [vmem:[%s253 + $0x40] sm:$0xf]
      %v303 = vld [vmem:[%s253 + $0x44] sm:$0xf]
      %v304 = vld [vmem:[%s253 + $0x48] sm:$0x3]
      %v321 = vunpack.c.l.b16 %v270
      %v322 = vunpack.c.h.b16 %v270
      %v323 = vunpack.c.l.b16 %v271
      %v324 = vunpack.c.h.b16 %v271
      %v325 = vunpack.c.l.b16 %v272
      %v326 = vunpack.c.h.b16 %v272
      %v327 = vunpack.c.l.b16 %v273
      %v328 = vunpack.c.h.b16 %v273
      %v329 = vunpack.c.l.b16 %v274
      %v330 = vunpack.c.h.b16 %v274
      %v331 = vunpack.c.l.b16 %v275
      %v332 = vunpack.c.h.b16 %v275
      %v333 = vunpack.c.l.b16 %v276
      %v334 = vunpack.c.h.b16 %v276
      %v335 = vunpack.c.l.b16 %v277
      %v336 = vunpack.c.h.b16 %v277
      %v337 = vunpack.c.l.b16 %v278
      %v338 = vunpack.c.h.b16 %v278
      %v339 = vunpack.c.l.b16 %v279
      %v340 = vunpack.c.h.b16 %v279
      %v341 = vunpack.c.l.b16 %v280
      %v342 = vunpack.c.h.b16 %v280
      %v343 = vunpack.c.l.b16 %v281
      %v344 = vunpack.c.h.b16 %v281
      %v345 = vunpack.c.l.b16 %v282
      %v346 = vunpack.c.h.b16 %v282
      %v347 = vunpack.c.l.b16 %v283
      %v348 = vunpack.c.h.b16 %v283
      %v349 = vunpack.c.l.b16 %v284
      %v350 = vunpack.c.h.b16 %v284
      %v351 = vunpack.c.l.b16 %v285
      %v352 = vunpack.c.h.b16 %v285
      %v353 = vpack.c.b16 %v323, %v321
      %v354 = vpack.c.b16 %v324, %v322
      %v355 = vpack.c.b16 %v327, %v325
      %v356 = vpack.c.b16 %v328, %v326
      %v357 = vpack.c.b16 %v331, %v329
      %v358 = vpack.c.b16 %v332, %v330
      %v359 = vpack.c.b16 %v335, %v333
      %v360 = vpack.c.b16 %v336, %v334
      %v361 = vpack.c.b16 %v339, %v337
      %v362 = vpack.c.b16 %v340, %v338
      %v363 = vpack.c.b16 %v343, %v341
      %v364 = vpack.c.b16 %v344, %v342
      %v365 = vpack.c.b16 %v347, %v345
      %v366 = vpack.c.b16 %v348, %v346
      %v367 = vpack.c.b16 %v351, %v349
      %v368 = vpack.c.b16 %v352, %v350
      %v396 = vunpack.c.l.b16 %v286
      %v397 = vunpack.c.l.b16 %v287
      %v398 = vunpack.c.l.b16 %v288
      %v399 = vunpack.c.l.b16 %v289
      %v400 = vunpack.c.l.b16 %v290
      %v401 = vunpack.c.l.b16 %v291
      %v402 = vunpack.c.l.b16 %v292
      %v403 = vunpack.c.l.b16 %v293
      %v404 = vunpack.c.l.b16 %v294
      %v405 = vunpack.c.l.b16 %v295
      %v406 = vunpack.c.l.b16 %v296
      %v407 = vunpack.c.l.b16 %v297
      %v408 = vunpack.c.l.b16 %v298
      %v409 = vunpack.c.l.b16 %v299
      %v410 = vunpack.c.l.b16 %v300
      %v411 = vunpack.c.l.b16 %v301
      %v412 = vunpack.c.l.b16 %v302
      %v413 = vunpack.c.l.b16 %v303
      %v414 = vunpack.c.l.b16 %v304
      %v415 = vpack.c.b16 %v397, %v396
      %v416 = vpack.c.b16 %v399, %v398
      %v417 = vpack.c.b16 %v401, %v400
      %v418 = vpack.c.b16 %v403, %v402
      %v419 = vpack.c.b16 %v405, %v404
      %v420 = vpack.c.b16 %v407, %v406
      %v421 = vpack.c.b16 %v409, %v408
      %v422 = vpack.c.b16 %v411, %v410
      %v423 = vpack.c.b16 %v413, %v412
      %v424 = vpack.c.b16 %v414, %v414
      %vm434 = vcmask 154624
      %v436 = vsel %vm434, %v354, 0
      %v439 = vsel %vm434, %v356, 0
      %v442 = vsel %vm434, %v358, 0
      %v445 = vsel %vm434, %v360, 0
      %v448 = vsel %vm434, %v362, 0
      %v451 = vsel %vm434, %v364, 0
      %v454 = vsel %vm434, %v366, 0
      %v457 = vsel %vm434, %v368, 0
      %vm459 = vcmask 1040384
      %vm460 = vcmask 1041408
      %v461 = vsel %vm459, 4294967295, 65535
      %v462 = vsel %vm460, %v461, 0
      %v464 = vand.u32 %v424, %v462
      %466 = vmatprep.subr.bf16.mxu0 0
      %467 = vmatpush1.bf16.msra.mxu0 %v422
      %468 = vmatprep.subr.bf16.mxu0 0
      %469 = vmatpush1.bf16.msra.mxu0 %v421
      %470 = vmatprep.subr.bf16.mxu0 0
      %471 = vmatpush1.bf16.msra.mxu0 %v420
      %472 = vmatprep.subr.bf16.mxu0 0
      %473 = vmatpush1.bf16.msra.mxu0 %v419
      %474 = vmatprep.subr.bf16.mxu0 0
      %475 = vmatpush1.bf16.msra.mxu0 %v418
      %476 = vmatprep.subr.bf16.mxu0 0
      %477 = vmatpush1.bf16.msra.mxu0 %v417
      %478 = vmatprep.subr.bf16.mxu0 0
      %479 = vmatpush1.bf16.msra.mxu0 %v416
      %480 = vmatprep.subr.bf16.mxu0 0
      %481 = vmatpush1.bf16.msra.mxu0 %v415
      %482 = vmatprep.subr.bf16.mxu0 0
      %483 = vmatpush2.bf16.msra.mxu0 0
      %484 = vmatprep.subr.bf16.mxu0 0
      %485 = vmatpush2.bf16.msra.mxu0 0
      %486 = vmatprep.subr.bf16.mxu0 0
      %487 = vmatpush2.bf16.msra.mxu0 0
      %488 = vmatprep.subr.bf16.mxu0 0
      %489 = vmatpush2.bf16.msra.mxu0 0
      %490 = vmatprep.subr.bf16.mxu0 0
      %491 = vmatpush2.bf16.msra.mxu0 0
      %492 = vmatprep.subr.bf16.mxu0 0
      %493 = vmatpush2.bf16.msra.mxu0 0
      %494 = vmatprep.subr.bf16.mxu0 0
      %495 = vmatpush2.bf16.msra.mxu0 %v464
      %496 = vmatprep.subr.bf16.mxu0 0
      %497 = vmatpush2.bf16.msra.mxu0 %v423
      %498 = vmatprep.mubr.bf16.mxu0 %v436
      %499 = vmatmul.mubr.bf16.gmra.mxu0 %v353
      %v500 = vpop.f32.mrf.mxu0
      %v501 = vadd.f32 0.0, %v500
      %v502 = vpop.f32.mrf.mxu0
      %v503 = vpop.f32.mrf.mxu0
      %v504 = vadd.f32 0.0, %v503
      %v505 = vpop.f32.mrf.mxu0
      %506 = vmatprep.mubr.bf16.mxu0 %v439
      %507 = vmatmul.mubr.bf16.gmra.mxu0 %v355
      %v508 = vpop.f32.mrf.mxu0
      %v509 = vadd.f32 0.0, %v508
      %v510 = vpop.f32.mrf.mxu0
      %v511 = vpop.f32.mrf.mxu0
      %v512 = vadd.f32 0.0, %v511
      %v513 = vpop.f32.mrf.mxu0
      %514 = vmatprep.mubr.bf16.mxu0 %v442
      %515 = vmatmul.mubr.bf16.gmra.mxu0 %v357
      %v516 = vpop.f32.mrf.mxu0
      %v517 = vadd.f32 0.0, %v516
      %v518 = vpop.f32.mrf.mxu0
      %v519 = vpop.f32.mrf.mxu0
      %v520 = vadd.f32 0.0, %v519
      %v521 = vpop.f32.mrf.mxu0
      %522 = vmatprep.mubr.bf16.mxu0 %v445
      %523 = vmatmul.mubr.bf16.gmra.mxu0 %v359
      %v524 = vpop.f32.mrf.mxu0
      %v525 = vadd.f32 0.0, %v524
      %v526 = vpop.f32.mrf.mxu0
      %v527 = vpop.f32.mrf.mxu0
      %v528 = vadd.f32 0.0, %v527
      %v529 = vpop.f32.mrf.mxu0
      %530 = vmatprep.mubr.bf16.mxu0 %v448
      %531 = vmatmul.mubr.bf16.gmra.mxu0 %v361
      %v532 = vpop.f32.mrf.mxu0
      %v533 = vadd.f32 0.0, %v532
      %v534 = vpop.f32.mrf.mxu0
      %v535 = vpop.f32.mrf.mxu0
      %v536 = vadd.f32 0.0, %v535
      %v537 = vpop.f32.mrf.mxu0
      %538 = vmatprep.mubr.bf16.mxu0 %v451
      %539 = vmatmul.mubr.bf16.gmra.mxu0 %v363
      %v540 = vpop.f32.mrf.mxu0
      %v541 = vadd.f32 0.0, %v540
      %v542 = vpop.f32.mrf.mxu0
      %v543 = vpop.f32.mrf.mxu0
      %v544 = vadd.f32 0.0, %v543
      %v545 = vpop.f32.mrf.mxu0
      %546 = vmatprep.mubr.bf16.mxu0 %v454
      %547 = vmatmul.mubr.bf16.gmra.mxu0 %v365
      %v548 = vpop.f32.mrf.mxu0
      %v549 = vadd.f32 0.0, %v548
      %v550 = vpop.f32.mrf.mxu0
      %v551 = vpop.f32.mrf.mxu0
      %v552 = vadd.f32 0.0, %v551
      %v553 = vpop.f32.mrf.mxu0
      %554 = vmatprep.mubr.bf16.mxu0 %v457
      %555 = vmatmul.mubr.bf16.gmra.mxu0 %v367
      %v556 = vpop.f32.mrf.mxu0
      %v557 = vadd.f32 0.0, %v556
      %v558 = vpop.f32.mrf.mxu0
      %v559 = vpop.f32.mrf.mxu0
      %v560 = vadd.f32 0.0, %v559
      %v561 = vpop.f32.mrf.mxu0
      %562 = vdwg.mxu0
      %v563 = vld [vmem:[%s256] sm:$0x1]
      %v565 = vlaneseq
      %v566 = vshrl.u32 %v565, 7
      %v567 = vsub.s32 0, %v566
      %v568 = vrot.slane %v563, %v567
      %v570 = vmul.f32 %v501, %v568
      %v571 = vmul.f32 %v504, %v568
      %v572 = vmul.f32 %v509, %v568
      %v573 = vmul.f32 %v512, %v568
      %v574 = vmul.f32 %v517, %v568
      %v575 = vmul.f32 %v520, %v568
      %v576 = vmul.f32 %v525, %v568
      %v577 = vmul.f32 %v528, %v568
      %v578 = vmul.f32 %v533, %v568
      %v579 = vmul.f32 %v536, %v568
      %v580 = vmul.f32 %v541, %v568
      %v581 = vmul.f32 %v544, %v568
      %v582 = vmul.f32 %v549, %v568
      %v583 = vmul.f32 %v552, %v568
      %v584 = vmul.f32 %v557, %v568
      %v585 = vmul.f32 %v560, %v568
      %v586 = vld [vmem:[%s259] sm:$0x1]
      %v588 = vlaneseq
      %v589 = vshrl.u32 %v588, 7
      %v590 = vsub.s32 0, %v589
      %v591 = vrot.slane %v586, %v590
      %v593 = vadd.f32 %v570, %v591
      %v594 = vadd.f32 %v571, %v591
      %v595 = vadd.f32 %v572, %v591
      %v596 = vadd.f32 %v573, %v591
      %v597 = vadd.f32 %v574, %v591
      %v598 = vadd.f32 %v575, %v591
      %v599 = vadd.f32 %v576, %v591
      %v600 = vadd.f32 %v577, %v591
      %v601 = vadd.f32 %v578, %v591
      %v602 = vadd.f32 %v579, %v591
      %v603 = vadd.f32 %v580, %v591
      %v604 = vadd.f32 %v581, %v591
      %v605 = vadd.f32 %v582, %v591
      %v606 = vadd.f32 %v583, %v591
      %v607 = vadd.f32 %v584, %v591
      %v608 = vadd.f32 %v585, %v591
      %v609 = vmax.f32 %v593, 0.0
      %v610 = vmax.f32 %v594, 0.0
      %v611 = vmax.f32 %v595, 0.0
      %v612 = vmax.f32 %v596, 0.0
      %v613 = vmax.f32 %v597, 0.0
      %v614 = vmax.f32 %v598, 0.0
      %v615 = vmax.f32 %v599, 0.0
      %v616 = vmax.f32 %v600, 0.0
      %v617 = vmax.f32 %v601, 0.0
      %v618 = vmax.f32 %v602, 0.0
      %v619 = vmax.f32 %v603, 0.0
      %v620 = vmax.f32 %v604, 0.0
      %v621 = vmax.f32 %v605, 0.0
      %v622 = vmax.f32 %v606, 0.0
      %v623 = vmax.f32 %v607, 0.0
      %v624 = vmax.f32 %v608, 0.0
      %v625 = vpack.c.bf16 %v610, %v609
      %v626 = vpack.c.bf16 %v612, %v611
      %v627 = vpack.c.bf16 %v614, %v613
      %v628 = vpack.c.bf16 %v616, %v615
      %v629 = vpack.c.bf16 %v618, %v617
      %v630 = vpack.c.bf16 %v620, %v619
      %v631 = vpack.c.bf16 %v622, %v621
      %v632 = vpack.c.bf16 %v624, %v623
      %v641 = vunpack.c.l.b16 %v625
      %v642 = vunpack.c.h.b16 %v625
      %v643 = vunpack.c.l.b16 %v626
      %v644 = vunpack.c.h.b16 %v626
      %v645 = vunpack.c.l.b16 %v627
      %v646 = vunpack.c.h.b16 %v627
      %v647 = vunpack.c.l.b16 %v628
      %v648 = vunpack.c.h.b16 %v628
      %v649 = vunpack.c.l.b16 %v629
      %v650 = vunpack.c.h.b16 %v629
      %v651 = vunpack.c.l.b16 %v630
      %v652 = vunpack.c.h.b16 %v630
      %v653 = vunpack.c.l.b16 %v631
      %v654 = vunpack.c.h.b16 %v631
      %v655 = vunpack.c.l.b16 %v632
      %v656 = vunpack.c.h.b16 %v632
      %v657 = vpack.c.b16 %v641, %v641
      %v658 = vpack.c.b16 %v642, %v642
      %v659 = vpack.c.b16 %v643, %v643
      %v660 = vpack.c.b16 %v644, %v644
      %v661 = vpack.c.b16 %v645, %v645
      %v662 = vpack.c.b16 %v646, %v646
      %v663 = vpack.c.b16 %v647, %v647
      %v664 = vpack.c.b16 %v648, %v648
      %v665 = vpack.c.b16 %v649, %v649
      %v666 = vpack.c.b16 %v650, %v650
      %v667 = vpack.c.b16 %v651, %v651
      %v668 = vpack.c.b16 %v652, %v652
      %v669 = vpack.c.b16 %v653, %v653
      %v670 = vpack.c.b16 %v654, %v654
      %v671 = vpack.c.b16 %v655, %v655
      %v672 = vpack.c.b16 %v656, %v656
      %689 = vst [vmem:[%s267] sm:$0xf] %v657
      %690 = vst [vmem:[%s267 + $0x4] sm:$0xf] %v658
      %691 = vst [vmem:[%s267 + $0x8] sm:$0xf] %v659
      %692 = vst [vmem:[%s267 + $0xc] sm:$0xf] %v660
      %693 = vst [vmem:[%s267 + $0x10] sm:$0xf] %v661
      %694 = vst [vmem:[%s267 + $0x14] sm:$0xf] %v662
      %695 = vst [vmem:[%s267 + $0x18] sm:$0xf] %v663
      %696 = vst [vmem:[%s267 + $0x1c] sm:$0xf] %v664
      %697 = vst [vmem:[%s267 + $0x20] sm:$0xf] %v665
      %698 = vst [vmem:[%s267 + $0x24] sm:$0xf] %v666
      %699 = vst [vmem:[%s267 + $0x28] sm:$0xf] %v667
      %700 = vst [vmem:[%s267 + $0x2c] sm:$0xf] %v668
      %701 = vst [vmem:[%s267 + $0x30] sm:$0xf] %v669
      %702 = vst [vmem:[%s267 + $0x34] sm:$0xf] %v670
      %703 = vst [vmem:[%s267 + $0x38] sm:$0xf] %v671
      %704 = vst [vmem:[%s267 + $0x3c] sm:$0xf] %v672
      %s705 = smul.u32 16, %s19
      %p706 = scmp.lt.s32.totalorder %s705, 31
      %s707 = scalar_select %p706, %s705, 31
      %p708 = scmp.lt.s32.totalorder %s20, 0
      %s709 = scalar_select %p708, %s20, 0
      %s710 = sadd.s32 %s709, %s707
      %s711 = smul.addr %s710, 4
      %s712 = scalar_lea.vmem %s4, %s711
      // Predicated region
      $region37: #{matmul_fused.1} parent=35 // pred_check
        %p713 = pneg %p151
      $region38: #{matmul_fused.1} parent=35 // pred_check_branch
        %715 = sbr.rel (%p713) target = $region40
      $region39: #{matmul_fused.1} parent=35 // pred_region
        %s716 = smul.u32 16, %s19
      $region40: #{matmul_fused.1} parent=35 // pred_fallthru
        _
    $region36: #{matmul_fused.1} parent=5 // pred_fallthru
      _
    %p717 = scmp.le.s32.totalorder 2, %s10
    // Predicated region
    $region41: #{matmul_fused.1} parent=5 // pred_check
      %p718 = pneg %p717
    $region42: #{matmul_fused.1} parent=5 // pred_check_branch
      %720 = sbr.rel (%p718) target = $region44
    $region43: #{matmul_fused.1} parent=5 // pred_region
      %s721 = ssub.s32 %s10, 2
      // Predicated region
      $region45: #{matmul_fused.1} parent=43 // pred_check
        %p722 = pneg %p157
      $region46: #{matmul_fused.1} parent=43 // pred_check_branch
        %724 = sbr.rel (%p722) target = $region48
      $region47: #{matmul_fused.1} parent=43 // pred_region
        %s725 = smul.u32 16, %s21
        %p726 = scmp.lt.s32.totalorder %s725, 31
        %s727 = scalar_select %p726, %s725, 31
        %p728 = scmp.lt.s32.totalorder %s22, 0
        %s729 = scalar_select %p728, %s22, 0
        %s730 = sadd.s32 %s729, %s727
        %s731 = smul.addr %s730, 4
        %s732 = scalar_lea.vmem %s4, %s731
      $region48: #{matmul_fused.1} parent=43 // pred_fallthru
        _
    $region44: #{matmul_fused.1} parent=5 // pred_fallthru
      _
  $region6: #{matmul_fused.1} parent=0 // loop_footer
    %s14 = sadd.s32 1, %s10
  $region7: #{matmul_fused.1} parent=0 // loop_footer_branch
    %9 = sbr.rel target = $region3
  $region8: #{matmul_fused.1} parent=0 // loop_exit
    _

</llo_original>
